<compile_context>
chip_gen: v7x
topology: tpu7x:2x2x1
jax: 0.10.0
libtpu: 0.0.40
codegen_flags: <defaults>
</compile_context>

<pallas_src>
import functools

import jax
import jax.numpy as jnp
from jax.experimental import pallas as pl
from jax.experimental.pallas import tpu as pltpu

LANE = 128   # TPU lane width
PROJ = 128   # nn.Linear(num_classes, 128) output width


# ----------------------------------------------------------------------------
# Fused kernel:
#   pooled_t   = masked_mean(emb, mask)                     [B, D]
#   pooled_i   = mean(img, HW)                              [B, Cin_pad]
#   text_feat  = relu(pooled_t @ Wt' + bt')                 [B, 128]
#   image_feat = relu(pooled_i @ Wi' + bi')                 [B, 128]
#   out        = text_feat @ Wc_t + image_feat @ Wc_i + bc  [B, 128]  (lane dense)
# ----------------------------------------------------------------------------
def _fused_forward_kernel(emb_ref, mask_ref, img_ref,
                          wt_ref, bt_ref, wi_ref, bi_ref,
                          wct_ref, wci_ref, bc_ref, out_ref):
    # ---- text branch: masked mean pool over the sequence (sublane reduce) --
    mask = mask_ref[...]                                       # [B, S, 1] f32
    tok_sum = jnp.sum(emb_ref[...] * mask, axis=1)             # [B, D]
    denom = jnp.maximum(jnp.sum(mask, axis=1), 1.0)            # [B, 1]
    pooled_t = tok_sum / denom                                 # [B, D]

    # ---- image branch: global average pool over H*W (lane reduce) ----------
    pooled_i = jnp.mean(img_ref[...], axis=-1)                 # [B, Cin_pad]

    # ---- folded (frozen backbone linear ∘ proj linear) + ReLU ---------------
    # bf16 MXU operands, f32 accumulation.  Dropout(0.3) is identity (eval).
    text_feat = jnp.maximum(
        jnp.dot(pooled_t.astype(jnp.bfloat16), wt_ref[...],
                preferred_element_type=jnp.float32) + bt_ref[...], 0.0)   # [B,128]
    image_feat = jnp.maximum(
        jnp.dot(pooled_i.astype(jnp.bfloat16), wi_ref[...],
                preferred_element_type=jnp.float32) + bi_ref[...], 0.0)   # [B,128]

    # ---- classifier with split weight: no lane-axis concat ------------------
    out_ref[...] = (
        jnp.dot(text_feat.astype(jnp.bfloat16), wct_ref[...],
                preferred_element_type=jnp.float32)
        + jnp.dot(image_feat.astype(jnp.bfloat16), wci_ref[...],
                  preferred_element_type=jnp.float32)
        + bc_ref[...])


# ----------------------------------------------------------------------------
# Offline weight preparation: fold frozen backbones into the head, split the
# classifier weight, pad to lane-dense / sublane-aligned shapes, cast to bf16.
# ----------------------------------------------------------------------------
def fold_head_params(params):
    tb, ib, hd = params["text_backbone"], params["image_backbone"], params["head"]
    num_classes = hd["wc"].shape[1]
    # Lane-dense output width (multiple of 128).
    n_pad = LANE * pl.cdiv(num_classes, LANE)
    cin = ib["w"].shape[0]
    cin_pad = 8 * pl.cdiv(cin, 8)  # sublane-align the tiny image contraction dim

    # Linear ∘ Linear composes exactly (ReLU comes after the composition).
    wt_f = (tb["w"] @ hd["wt"]).astype(jnp.bfloat16)                     # [D, 128]
    bt_f = tb["b"][None, :] @ hd["wt"] + hd["bt"]                        # [1, 128] f32
    wi_f = jnp.pad(ib["w"] @ hd["wi"],
                   ((0, cin_pad - cin), (0, 0))).astype(jnp.bfloat16)    # [Cin_pad, 128]
    bi_f = ib["b"][None, :] @ hd["wi"] + hd["bi"]                        # [1, 128] f32

    pad_n = ((0, 0), (0, n_pad - num_classes))
    wc_t = jnp.pad(hd["wc"][:PROJ, :], pad_n).astype(jnp.bfloat16)       # [128, n_pad]
    wc_i = jnp.pad(hd["wc"][PROJ:, :], pad_n).astype(jnp.bfloat16)       # [128, n_pad]
    bc_p = jnp.pad(hd["bc"], pad_n)                                      # [1, n_pad] f32

    return {"emb": tb["emb"], "wt": wt_f, "bt": bt_f, "wi": wi_f, "bi": bi_f,
            "wc_t": wc_t, "wc_i": wc_i, "bc": bc_p}


# ----------------------------------------------------------------------------
# Forward: embedding gather stays in XLA; everything else is one pallas_call.
# ----------------------------------------------------------------------------
@functools.partial(jax.jit, static_argnums=(4,))
def forward(input_ids, attention_mask, image_input, folded, num_classes):
    B, S = input_ids.shape
    emb = folded["emb"][input_ids]                              # [B, S, D] gather (XLA)
    mask = attention_mask[..., None].astype(jnp.float32)        # [B, S, 1]

    cin = image_input.shape[1]
    hw = image_input.shape[2] * image_input.shape[3]
    cin_pad = folded["wi"].shape[0]
    img = image_input.reshape(B, cin, hw)                       # NCHW -> [B, Cin, H*W]
    img = jnp.pad(img, ((0, 0), (0, cin_pad - cin), (0, 0)))    # zero chans x zero rows

    n_pad = folded["wc_t"].shape[1]
    vmem = pl.BlockSpec(memory_space=pltpu.MemorySpace.VMEM)

    out_padded = pl.pallas_call(
        _fused_forward_kernel,
        out_shape=jax.ShapeDtypeStruct((B, n_pad), jnp.float32),
        in_specs=[vmem] * 10,
        out_specs=vmem,
        # NOTE: at production batch sizes, switch to grid=(pl.cdiv(B, TB),)
        # with TB a multiple of 8 (ideally 128+ rows), row-tiled BlockSpecs for
        # emb/mask/img/out, constant index_map for the (VMEM-resident) weights,
        # and dimension_semantics=("parallel",) so v7x megacore shards the
        # batch across both TensorCores.  Gridless full-block is optimal here
        # (B=2): no pipeline, one DMA per operand, everything fits in VMEM.
    )(emb, mask, img,
      folded["wt"], folded["bt"], folded["wi"], folded["bi"],
      folded["wc_t"], folded["wc_i"], folded["bc"])

    return out_padded[:, :num_classes]


# ----------------------------------------------------------------------------
# Deterministic parameter init (mirrors the nn.Module shapes).
# ----------------------------------------------------------------------------
def init_params(key, num_classes, vocab=64, emb_dim=32, img_chan=3):
    ks = jax.random.split(key, 11)
    s = 0.5
    return {
        "text_backbone": {
            "emb": s * jax.random.normal(ks[0], (vocab, emb_dim), jnp.float32),
            "w":   s * jax.random.normal(ks[1], (emb_dim, num_classes), jnp.float32),
            "b":   s * jax.random.normal(ks[2], (num_classes,), jnp.float32),
        },
        "image_backbone": {
            "w": s * jax.random.normal(ks[3], (img_chan, num_classes), jnp.float32),
            "b": s * jax.random.normal(ks[4], (num_classes,), jnp.float32),
        },
        "head": {
            # nn.Linear(num_classes, 128) stored as [in, out] for x @ W
            "wt": s * jax.random.normal(ks[5], (num_classes, PROJ), jnp.float32),
            "bt": s * jax.random.normal(ks[6], (1, PROJ), jnp.float32),
            "wi": s * jax.random.normal(ks[7], (num_classes, PROJ), jnp.float32),
            "bi": s * jax.random.normal(ks[8], (1, PROJ), jnp.float32),
            # nn.Linear(256, num_classes)
            "wc": s * jax.random.normal(ks[9], (2 * PROJ, num_classes), jnp.float32),
            "bc": s * jax.random.normal(ks[10], (1, num_classes), jnp.float32),
        },
    }


if __name__ == "__main__":
    B, S, C = 2, 8, 16           # batch, seq len, num_classes
    H = W = 16                   # image spatial
    CIN = 3                      # image channels (NCHW)

    key = jax.random.PRNGKey(0)
    k_ids, k_img, k_params = jax.random.split(key, 3)

    input_ids = jax.random.randint(k_ids, (B, S), 0, 64, dtype=jnp.int32)
    lengths = jnp.array([S, S - 3], dtype=jnp.int32)   # ragged valid lengths
    attention_mask = (jnp.arange(S)[None, :] < lengths[:, None]).astype(jnp.int32)
    image_input = jax.random.normal(k_img, (B, CIN, H, W), jnp.float32)

    params = init_params(k_params, C)
    folded = fold_head_params(params)                  # offline weight prep

    out = forward(input_ids, attention_mask, image_input, folded, C)
    out = jax.block_until_ready(out)

    # -------- module-faithful f32 reference (unfolded, concat form) ---------
    tb, ib, hd = params["text_backbone"], params["image_backbone"], params["head"]
    emb = tb["emb"][input_ids]
    m = attention_mask[..., None].astype(jnp.float32)
    pooled_t = (emb * m).sum(axis=1) / jnp.maximum(m.sum(axis=1), 1.0)
    text_logits = pooled_t @ tb["w"] + tb["b"]
    pooled_i = image_input.mean(axis=(2, 3))
    image_logits = pooled_i @ ib["w"] + ib["b"]
    tf = jnp.maximum(text_logits @ hd["wt"] + hd["bt"], 0.0)
    imf = jnp.maximum(image_logits @ hd["wi"] + hd["bi"], 0.0)
    ref = jnp.concatenate([tf, imf], axis=1) @ hd["wc"] + hd["bc"]

    assert out.shape == (B, C)
    # bf16 head weights / bf16 MXU operands -> compare at bf16-appropriate
    # tolerance against the pure-f32 module reference (outputs are O(1-30)).
    err = float(jnp.max(jnp.abs(out - ref)))
    assert jnp.allclose(out, ref, rtol=3e-2, atol=3e-1), f"max abs err {err}"

    print("KERNEL_OK")
</pallas_src>

<mosaic_0001>
module attributes {stable_mosaic.version = 11 : i64} {
  func.func @_fused_forward_kernel(%arg0: memref<2x8x32xf32, #tpu.memory_space<vmem>>, %arg1: memref<2x8x1xf32, #tpu.memory_space<vmem>>, %arg2: memref<2x8x256xf32, #tpu.memory_space<vmem>>, %arg3: memref<32x128xbf16, #tpu.memory_space<vmem>>, %arg4: memref<1x128xf32, #tpu.memory_space<vmem>>, %arg5: memref<8x128xbf16, #tpu.memory_space<vmem>>, %arg6: memref<1x128xf32, #tpu.memory_space<vmem>>, %arg7: memref<128x128xbf16, #tpu.memory_space<vmem>>, %arg8: memref<128x128xbf16, #tpu.memory_space<vmem>>, %arg9: memref<1x128xf32, #tpu.memory_space<vmem>>, %arg10: memref<2x128xf32, #tpu.memory_space<vmem>>) attributes {dimension_semantics = [], scalar_prefetch = 0 : i64, scratch_operands = 0 : i64, tpu.core_type = #tpu.core_type<tc>} {
    %c0 = arith.constant 0 : index
    %c0_0 = arith.constant 0 : index
    %c0_1 = arith.constant 0 : index
    %0 = vector.load %arg1[%c0, %c0_0, %c0_1] : memref<2x8x1xf32, #tpu.memory_space<vmem>>, vector<2x8x1xf32>
    %c0_2 = arith.constant 0 : index
    %c0_3 = arith.constant 0 : index
    %c0_4 = arith.constant 0 : index
    %1 = vector.load %arg0[%c0_2, %c0_3, %c0_4] : memref<2x8x32xf32, #tpu.memory_space<vmem>>, vector<2x8x32xf32>
    %2 = vector.broadcast %0 : vector<2x8x1xf32> to vector<2x8x32xf32>
    %3 = arith.mulf %1, %2 : vector<2x8x32xf32>
    %cst = arith.constant dense<0.000000e+00> : vector<2x32xf32>
    %4 = vector.multi_reduction <add>, %3, %cst [1] : vector<2x8x32xf32> to vector<2x32xf32>
    %cst_5 = arith.constant dense<0.000000e+00> : vector<2x1xf32>
    %5 = vector.multi_reduction <add>, %0, %cst_5 [1] : vector<2x8x1xf32> to vector<2x1xf32>
    %cst_6 = arith.constant 1.000000e+00 : f32
    %6 = vector.broadcast %cst_6 : f32 to vector<2x1xf32>
    %7 = arith.maximumf %5, %6 : vector<2x1xf32>
    %8 = vector.broadcast %7 : vector<2x1xf32> to vector<2x32xf32>
    %9 = arith.divf %4, %8 : vector<2x32xf32>
    %c0_7 = arith.constant 0 : index
    %c0_8 = arith.constant 0 : index
    %c0_9 = arith.constant 0 : index
    %10 = vector.load %arg2[%c0_7, %c0_8, %c0_9] : memref<2x8x256xf32, #tpu.memory_space<vmem>>, vector<2x8x256xf32>
    %cst_10 = arith.constant dense<0.000000e+00> : vector<2x8xf32>
    %11 = vector.multi_reduction <add>, %10, %cst_10 [2] : vector<2x8x256xf32> to vector<2x8xf32>
    %cst_11 = arith.constant 2.560000e+02 : f32
    %12 = vector.broadcast %cst_11 : f32 to vector<2x8xf32>
    %13 = arith.divf %11, %12 : vector<2x8xf32>
    %14 = arith.truncf %9 : vector<2x32xf32> to vector<2x32xbf16>
    %c0_12 = arith.constant 0 : index
    %c0_13 = arith.constant 0 : index
    %15 = vector.load %arg3[%c0_12, %c0_13] : memref<32x128xbf16, #tpu.memory_space<vmem>>, vector<32x128xbf16>
    %cst_14 = arith.constant dense<0.000000e+00> : vector<2x128xf32>
    %16 = tpu.matmul %14, %15, %cst_14 {dimension_numbers = #tpu.dot_dimension_numbers<[1], [0], [0], [1], [0, 0, 1, 1], [], []>} : vector<2x32xbf16>, vector<32x128xbf16>, vector<2x128xf32> -> vector<2x128xf32>
    %c0_15 = arith.constant 0 : index
    %c0_16 = arith.constant 0 : index
    %17 = vector.load %arg4[%c0_15, %c0_16] : memref<1x128xf32, #tpu.memory_space<vmem>>, vector<1x128xf32>
    %18 = vector.broadcast %17 : vector<1x128xf32> to vector<2x128xf32>
    %19 = arith.addf %16, %18 : vector<2x128xf32>
    %cst_17 = arith.constant 0.000000e+00 : f32
    %20 = vector.broadcast %cst_17 : f32 to vector<2x128xf32>
    %21 = arith.maximumf %19, %20 : vector<2x128xf32>
    %22 = arith.truncf %13 : vector<2x8xf32> to vector<2x8xbf16>
    %c0_18 = arith.constant 0 : index
    %c0_19 = arith.constant 0 : index
    %23 = vector.load %arg5[%c0_18, %c0_19] : memref<8x128xbf16, #tpu.memory_space<vmem>>, vector<8x128xbf16>
    %cst_20 = arith.constant dense<0.000000e+00> : vector<2x128xf32>
    %24 = tpu.matmul %22, %23, %cst_20 {dimension_numbers = #tpu.dot_dimension_numbers<[1], [0], [0], [1], [0, 0, 1, 1], [], []>} : vector<2x8xbf16>, vector<8x128xbf16>, vector<2x128xf32> -> vector<2x128xf32>
    %c0_21 = arith.constant 0 : index
    %c0_22 = arith.constant 0 : index
    %25 = vector.load %arg6[%c0_21, %c0_22] : memref<1x128xf32, #tpu.memory_space<vmem>>, vector<1x128xf32>
    %26 = vector.broadcast %25 : vector<1x128xf32> to vector<2x128xf32>
    %27 = arith.addf %24, %26 : vector<2x128xf32>
    %cst_23 = arith.constant 0.000000e+00 : f32
    %28 = vector.broadcast %cst_23 : f32 to vector<2x128xf32>
    %29 = arith.maximumf %27, %28 : vector<2x128xf32>
    %30 = arith.truncf %21 : vector<2x128xf32> to vector<2x128xbf16>
    %c0_24 = arith.constant 0 : index
    %c0_25 = arith.constant 0 : index
    %31 = vector.load %arg7[%c0_24, %c0_25] : memref<128x128xbf16, #tpu.memory_space<vmem>>, vector<128x128xbf16>
    %cst_26 = arith.constant dense<0.000000e+00> : vector<2x128xf32>
    %32 = tpu.matmul %30, %31, %cst_26 {dimension_numbers = #tpu.dot_dimension_numbers<[1], [0], [0], [1], [0, 0, 1, 1], [], []>} : vector<2x128xbf16>, vector<128x128xbf16>, vector<2x128xf32> -> vector<2x128xf32>
    %33 = arith.truncf %29 : vector<2x128xf32> to vector<2x128xbf16>
    %c0_27 = arith.constant 0 : index
    %c0_28 = arith.constant 0 : index
    %34 = vector.load %arg8[%c0_27, %c0_28] : memref<128x128xbf16, #tpu.memory_space<vmem>>, vector<128x128xbf16>
    %cst_29 = arith.constant dense<0.000000e+00> : vector<2x128xf32>
    %35 = tpu.matmul %33, %34, %cst_29 {dimension_numbers = #tpu.dot_dimension_numbers<[1], [0], [0], [1], [0, 0, 1, 1], [], []>} : vector<2x128xbf16>, vector<128x128xbf16>, vector<2x128xf32> -> vector<2x128xf32>
    %36 = arith.addf %32, %35 : vector<2x128xf32>
    %c0_30 = arith.constant 0 : index
    %c0_31 = arith.constant 0 : index
    %37 = vector.load %arg9[%c0_30, %c0_31] : memref<1x128xf32, #tpu.memory_space<vmem>>, vector<1x128xf32>
    %38 = vector.broadcast %37 : vector<1x128xf32> to vector<2x128xf32>
    %39 = arith.addf %36, %38 : vector<2x128xf32>
    %c0_32 = arith.constant 0 : index
    %c0_33 = arith.constant 0 : index
    %40 = vector.load %arg10[%c0_32, %c0_33] : memref<2x128xf32, #tpu.memory_space<vmem>>, vector<2x128xf32>
    tpu.vector_store %arg10[%c0_32, %c0_33], %39 {strides = array<i32>} : memref<2x128xf32, #tpu.memory_space<vmem>>, vector<2x128xf32>,
    return
  }
}

</mosaic_0001>

<llo_original>
// kernel: forward.1
$region0: #{forward.1}
  #allocation0 [shape = 'u32[]', space=smem, size = 0x4, offset = 0x4, fixed_abs, tag = 'smem constant byte address 0x4 - core index']
  #allocation1 [shape = 'u32[144,128]{1,0:T(1,128)}', space=vmem, size = 0x12000, scoped, tag = 'internal scratch']
  %s0 = inlined_call_operand.vmem [shape: f32[2,8,32], index: 0, kind: input, shape index: {}]
  %s1 = inlined_call_operand.vmem [shape: f32[2,8,1], index: 1, kind: input, shape index: {}]
  %s2 = inlined_call_operand.vmem [shape: f32[2,8,256], index: 2, kind: input, shape index: {}]
  %s3 = inlined_call_operand.vmem [shape: bf16[32,128], index: 3, kind: input, shape index: {}]
  %s4 = inlined_call_operand.vmem [shape: f32[1,128], index: 4, kind: input, shape index: {}]
  %s5 = inlined_call_operand.vmem [shape: bf16[8,128], index: 5, kind: input, shape index: {}]
  %s6 = inlined_call_operand.vmem [shape: f32[1,128], index: 6, kind: input, shape index: {}]
  %s7 = inlined_call_operand.vmem [shape: bf16[128,128], index: 7, kind: input, shape index: {}]
  %s8 = inlined_call_operand.vmem [shape: bf16[128,128], index: 8, kind: input, shape index: {}]
  %s9 = inlined_call_operand.vmem [shape: f32[1,128], index: 9, kind: input, shape index: {}]
  %s10 = inlined_call_operand.hbm [shape: f32[2,128], index: 10, kind: output, shape index: {}]
  %s11 = sld [smem:[#allocation0]]
  $region50: #{forward.1} parent=0
    _
  %s13 = ssub.s32 1, %s11
  %s14 = scalar_select 0, %s13, %s11
  $region1: #{forward.1} parent=0
    #allocation2 [shape = 'u8[1024]{0}', space=vmem, size = 0x400, scoped, tag = 'output window, operand 0, single buffered']
    #allocation3 [shape = 's32[1]{0}', space=sflag, size = 0x4, scoped, tag = 'scoped memory for forward.1']
    %15 = vsyncpa [#allocation3], 0
    // Predicated region
    $region2: #{forward.1} parent=1 // pred_check
      _
    $region3: #{forward.1} parent=1 // pred_check_branch
      %17 = sbr.rel (0) target = $region5
    $region4: #{forward.1} parent=1 // pred_region
      _
    $region5: #{forward.1} parent=1 // pred_fallthru
      _
    // Predicated region
    $region6: #{forward.1} parent=1 // pred_check
      _
    $region7: #{forward.1} parent=1 // pred_check_branch
      %19 = sbr.rel (0) target = $region9
    $region8: #{forward.1} parent=1 // pred_region
      _
    $region9: #{forward.1} parent=1 // pred_fallthru
      _
    // Predicated region
    $region10: #{forward.1} parent=1 // pred_check
      _
    $region11: #{forward.1} parent=1 // pred_check_branch
      %21 = sbr.rel (0) target = $region13
    $region12: #{forward.1} parent=1 // pred_region
      _
    $region13: #{forward.1} parent=1 // pred_fallthru
      _
    // Predicated region
    $region14: #{forward.1} parent=1 // pred_check
      _
    $region15: #{forward.1} parent=1 // pred_check_branch
      %23 = sbr.rel (0) target = $region17
    $region16: #{forward.1} parent=1 // pred_region
      _
    $region17: #{forward.1} parent=1 // pred_fallthru
      _
    // Predicated region
    $region18: #{forward.1} parent=1 // pred_check
      _
    $region19: #{forward.1} parent=1 // pred_check_branch
      %25 = sbr.rel (0) target = $region21
    $region20: #{forward.1} parent=1 // pred_region
      _
    $region21: #{forward.1} parent=1 // pred_fallthru
      _
    // Predicated region
    $region22: #{forward.1} parent=1 // pred_check
      _
    $region23: #{forward.1} parent=1 // pred_check_branch
      %27 = sbr.rel (0) target = $region25
    $region24: #{forward.1} parent=1 // pred_region
      _
    $region25: #{forward.1} parent=1 // pred_fallthru
      _
    // Predicated region
    $region26: #{forward.1} parent=1 // pred_check
      _
    $region27: #{forward.1} parent=1 // pred_check_branch
      %29 = sbr.rel (0) target = $region29
    $region28: #{forward.1} parent=1 // pred_region
      _
    $region29: #{forward.1} parent=1 // pred_fallthru
      _
    // Predicated region
    $region30: #{forward.1} parent=1 // pred_check
      _
    $region31: #{forward.1} parent=1 // pred_check_branch
      %31 = sbr.rel (0) target = $region33
    $region32: #{forward.1} parent=1 // pred_region
      _
    $region33: #{forward.1} parent=1 // pred_fallthru
      _
    // Predicated region
    $region34: #{forward.1} parent=1 // pred_check
      _
    $region35: #{forward.1} parent=1 // pred_check_branch
      %33 = sbr.rel (0) target = $region37
    $region36: #{forward.1} parent=1 // pred_region
      _
    $region37: #{forward.1} parent=1 // pred_fallthru
      _
    // Predicated region
    $region38: #{forward.1} parent=1 // pred_check
      _
    $region39: #{forward.1} parent=1 // pred_check_branch
      %35 = sbr.rel (0) target = $region41
    $region40: #{forward.1} parent=1 // pred_region
      _
    $region41: #{forward.1} parent=1 // pred_fallthru
      _
    %v37 = vld [vmem:[%s1] sm:$0xff]
    %v38 = vld [vmem:[%s1 + $0x8] sm:$0xff]
    %v39 = vld [vmem:[%s0] sm:$0xff]
    %v40 = vld [vmem:[%s0 + $0x8] sm:$0xff]
    %42 = vset.pattern.permute.xlu0 0
    %43 = vperm.xlu0 %42, %v37
    %v44 = vpop.permute.xlu0 %43
    %47 = vset.pattern.permute.xlu0 0
    %48 = vperm.xlu0 %47, %v38
    %v49 = vpop.permute.xlu0 %48
    %v51 = vmul.f32 %v39, %v44
    %v52 = vmul.f32 %v40, %v49
    %vm53 = vcmask 261120
    %v54 = vsel %vm53, %v51, 0.0
    %v55 = vrot.slane %v54, 4
    %v56 = vadd.f32 %v54, %v55
    %v57 = vrot.slane %v56, 2
    %v58 = vadd.f32 %v56, %v57
    %v59 = vrot.slane %v58, 1
    %v60 = vadd.f32 %v58, %v59
    %v61 = vsel %vm53, %v52, 0.0
    %v62 = vrot.slane %v61, 4
    %v63 = vadd.f32 %v61, %v62
    %v64 = vrot.slane %v63, 2
    %v65 = vadd.f32 %v63, %v64
    %v66 = vrot.slane %v65, 1
    %v67 = vadd.f32 %v65, %v66
    %vm68 = vcmask 7168
    %v69 = vsel %vm68, %v37, 0.0
    %v70 = vrot.slane %v69, 4
    %v71 = vadd.f32 %v69, %v70
    %v72 = vrot.slane %v71, 2
    %v73 = vadd.f32 %v71, %v72
    %v74 = vrot.slane %v73, 1
    %v75 = vadd.f32 %v73, %v74
    %v76 = vsel %vm68, %v38, 0.0
    %v77 = vrot.slane %v76, 4
    %v78 = vadd.f32 %v76, %v77
    %v79 = vrot.slane %v78, 2
    %v80 = vadd.f32 %v78, %v79
    %v81 = vrot.slane %v80, 1
    %v82 = vadd.f32 %v80, %v81
    %v83 = vmax.f32 %v75, 1.0
    %v84 = vmax.f32 %v82, 1.0
    %86 = vset.pattern.permute.xlu0 0
    %87 = vperm.xlu0 %86, %v83
    %v88 = vpop.permute.xlu0 %87
    %91 = vset.pattern.permute.xlu0 0
    %92 = vperm.xlu0 %91, %v84
    %v93 = vpop.permute.xlu0 %92
    %v95 = vrcp.pop %v88
    %v96 = vmul.f32 %v60, %v95
    %v97 = vrcp.pop %v93
    %v98 = vmul.f32 %v67, %v97
    %v99 = vld [vmem:[%s2] sm:$0xff]
    %v100 = vld [vmem:[%s2 + $0x8] sm:$0xff]
    %v101 = vld [vmem:[%s2 + $0x10] sm:$0xff]
    %v102 = vld [vmem:[%s2 + $0x18] sm:$0xff]
    %v103 = vadd.f32 %v99, %v100
    %104 = vadd.xlane.f32.xlu0 %v103
    %v105 = vpop.xlane.xlu0 %104
    %v106 = vadd.f32 %v101, %v102
    %107 = vadd.xlane.f32.xlu0 %v106
    %v108 = vpop.xlane.xlu0 %107
    %v109 = vrcp.pop 256.0
    %v110 = vmul.f32 %v105, %v109
    %v111 = vmul.f32 %v108, %v109
    %v112 = vpack.c.bf16 %v96, %v96
    %v113 = vpack.c.bf16 %v98, %v98
    %v114 = vld [vmem:[%s3] sm:$0xf]
    %v115 = vld [vmem:[%s3 + $0x4] sm:$0xf]
    %v116 = vld [vmem:[%s3 + $0x8] sm:$0xf]
    %v117 = vld [vmem:[%s3 + $0xc] sm:$0xf]
    %v118 = vld [vmem:[%s4] sm:$0x1]
    %v120 = vlaneseq
    %v121 = vshrl.u32 %v120, 7
    %v122 = vsub.s32 0, %v121
    %v123 = vrot.slane %v118, %v122
    %v127 = vunpack.c.l.b16 %v112
    %v128 = vunpack.c.l.b16 %v113
    %vm129 = vcmask 1041409
    %v130 = vsel %vm129, %v128, %v127
    %v131 = vpack.c.b16 %v130, %v130
    %v136 = vunpack.c.l.b16 %v114
    %v137 = vunpack.c.l.b16 %v115
    %v138 = vunpack.c.l.b16 %v116
    %v139 = vunpack.c.l.b16 %v117
    %v140 = vpack.c.b16 %v137, %v136
    %v141 = vpack.c.b16 %v139, %v138
    %v145 = vsel %vm53, %v131, 0
    %147 = vmatprep.subr.bf16.mxu0 0
    %148 = vmatpush1.bf16.msra.mxu0 %v140
    %149 = vmatprep.subr.bf16.mxu0 0
    %150 = vmatpush1.bf16.msra.mxu0 %v141
    %151 = vmatprep.subr.bf16.mxu0 0
    %152 = vmatpush1.bf16.msra.mxu0 0
    %153 = vmatprep.subr.bf16.mxu0 0
    %154 = vmatpush1.bf16.msra.mxu0 0
    %155 = vmatprep.subr.bf16.mxu0 0
    %156 = vmatpush1.bf16.msra.mxu0 0
    %157 = vmatprep.subr.bf16.mxu0 0
    %158 = vmatpush1.bf16.msra.mxu0 0
    %159 = vmatprep.subr.bf16.mxu0 0
    %160 = vmatpush1.bf16.msra.mxu0 0
    %161 = vmatprep.subr.bf16.mxu0 0
    %162 = vmatpush1.bf16.msra.mxu0 0
    %163 = vmatprep.subr.bf16.mxu0 0
    %164 = vmatpush1.bf16.msra.mxu0 0
    %165 = vmatprep.subr.bf16.mxu0 0
    %166 = vmatpush1.bf16.msra.mxu0 0
    %167 = vmatprep.subr.bf16.mxu0 0
    %168 = vmatpush1.bf16.msra.mxu0 0
    %169 = vmatprep.subr.bf16.mxu0 0
    %170 = vmatpush1.bf16.msra.mxu0 0
    %171 = vmatprep.subr.bf16.mxu0 0
    %172 = vmatpush1.bf16.msra.mxu0 0
    %173 = vmatprep.subr.bf16.mxu0 0
    %174 = vmatpush1.bf16.msra.mxu0 0
    %175 = vmatprep.subr.bf16.mxu0 0
    %176 = vmatpush1.bf16.msra.mxu0 0
    %177 = vmatprep.subr.bf16.mxu0 0
    %178 = vmatpush1.bf16.msra.mxu0 0
    %179 = vmatprep.mubr.bf16.mxu0 0
    %180 = vmatmul.mubr.bf16.gmra.mrb[0].mxu0 %v145
    %v181 = vpop.f32.mrb[0].mxu0
    %v182 = vadd.f32 %v123, %v181
    %v183 = vpop.f32.mrb[0].mxu0
    %v184 = vpop.f32.mrb[0].mxu0
    %v185 = vpop.f32.mrb[0].mxu0
    %186 = vdwg.mxu0
    %v187 = vmax.f32 %v182, 0.0
    %v188 = vpack.c.bf16 %v110, %v110
    %v189 = vpack.c.bf16 %v111, %v111
    %v190 = vld [vmem:[%s5] sm:$0xf]
    %v191 = vld [vmem:[%s6] sm:$0x1]
    %v193 = vlaneseq
    %v194 = vshrl.u32 %v193, 7
    %v195 = vsub.s32 0, %v194
    %v196 = vrot.slane %v191, %v195
    %v200 = vunpack.c.l.b16 %v188
    %v201 = vunpack.c.l.b16 %v189
    %v202 = vlaneseq
    %v203 = vand.u32 %v202, 127
    %v204 = vlaneseq
    %v205 = vshrl.u32 %v204, 7
    %v206 = vsub.s32 %v203, %v205
    %v207 = vrot.slane %v200, %v206
    %v208 = vlaneseq
    %v209 = vshrl.u32 %v208, 7
    %v210 = vsub.s32 %v203, %v209
    %v211 = vrot.slane %v201, %v210
    %v212 = vsel %vm129, %v211, %v207
    %v213 = vpack.c.b16 %v212, %v212
    %vm214 = vcmask 64512
    %v216 = vsel %vm214, %v213, 0
    %vm218 = vcmask 1043456
    %v220 = vsel %vm218, %v190, 0
    %222 = vmatprep.subr.bf16.mxu0 0
    %223 = vmatpush1.bf16.msra.mxu0 %v220
    %224 = vmatprep.subr.bf16.mxu0 0
    %225 = vmatpush1.bf16.msra.mxu0 0
    %226 = vmatprep.subr.bf16.mxu0 0
    %227 = vmatpush1.bf16.msra.mxu0 0
    %228 = vmatprep.subr.bf16.mxu0 0
    %229 = vmatpush1.bf16.msra.mxu0 0
    %230 = vmatprep.subr.bf16.mxu0 0
    %231 = vmatpush1.bf16.msra.mxu0 0
    %232 = vmatprep.subr.bf16.mxu0 0
    %233 = vmatpush1.bf16.msra.mxu0 0
    %234 = vmatprep.subr.bf16.mxu0 0
    %235 = vmatpush1.bf16.msra.mxu0 0
    %236 = vmatprep.subr.bf16.mxu0 0
    %237 = vmatpush1.bf16.msra.mxu0 0
    %238 = vmatprep.subr.bf16.mxu0 0
    %239 = vmatpush1.bf16.msra.mxu0 0
    %240 = vmatprep.subr.bf16.mxu0 0
    %241 = vmatpush1.bf16.msra.mxu0 0
    %242 = vmatprep.subr.bf16.mxu0 0
    %243 = vmatpush1.bf16.msra.mxu0 0
    %244 = vmatprep.subr.bf16.mxu0 0
    %245 = vmatpush1.bf16.msra.mxu0 0
    %246 = vmatprep.subr.bf16.mxu0 0
    %247 = vmatpush1.bf16.msra.mxu0 0
    %248 = vmatprep.subr.bf16.mxu0 0
    %249 = vmatpush1.bf16.msra.mxu0 0
    %250 = vmatprep.subr.bf16.mxu0 0
    %251 = vmatpush1.bf16.msra.mxu0 0
    %252 = vmatprep.subr.bf16.mxu0 0
    %253 = vmatpush1.bf16.msra.mxu0 0
    %254 = vmatprep.mubr.bf16.mxu0 0
    %255 = vmatmul.mubr.bf16.gmra.mrb[0].mxu0 %v216
    %v256 = vpop.f32.mrb[0].mxu0
    %v257 = vadd.f32 %v196, %v256
    %v258 = vpop.f32.mrb[0].mxu0
    %v259 = vpop.f32.mrb[0].mxu0
    %v260 = vpop.f32.mrb[0].mxu0
    %261 = vdwg.mxu0
    %v262 = vmax.f32 %v257, 0.0
    %v263 = vpack.c.bf16 %v187, %v187
    %v264 = vld [vmem:[%s7] sm:$0xf]
    %v265 = vld [vmem:[%s7 + $0x4] sm:$0xf]
    %v266 = vld [vmem:[%s7 + $0x8] sm:$0xf]
    %v267 = vld [vmem:[%s7 + $0xc] sm:$0xf]
    %v268 = vld [vmem:[%s7 + $0x10] sm:$0xf]
    %v269 = vld [vmem:[%s7 + $0x14] sm:$0xf]
    %v270 = vld [vmem:[%s7 + $0x18] sm:$0xf]
    %v271 = vld [vmem:[%s7 + $0x1c] sm:$0xf]
    %v272 = vld [vmem:[%s7 + $0x20] sm:$0xf]
    %v273 = vld [vmem:[%s7 + $0x24] sm:$0xf]
    %v274 = vld [vmem:[%s7 + $0x28] sm:$0xf]
    %v275 = vld [vmem:[%s7 + $0x2c] sm:$0xf]
    %v276 = vld [vmem:[%s7 + $0x30] sm:$0xf]
    %v277 = vld [vmem:[%s7 + $0x34] sm:$0xf]
    %v278 = vld [vmem:[%s7 + $0x38] sm:$0xf]
    %v279 = vld [vmem:[%s7 + $0x3c] sm:$0xf]
    %v280 = vpack.c.bf16 %v262, %v262
    %v281 = vld [vmem:[%s8] sm:$0xf]
    %v282 = vld [vmem:[%s8 + $0x4] sm:$0xf]
    %v283 = vld [vmem:[%s8 + $0x8] sm:$0xf]
    %v284 = vld [vmem:[%s8 + $0xc] sm:$0xf]
    %v285 = vld [vmem:[%s8 + $0x10] sm:$0xf]
    %v286 = vld [vmem:[%s8 + $0x14] sm:$0xf]
    %v287 = vld [vmem:[%s8 + $0x18] sm:$0xf]
    %v288 = vld [vmem:[%s8 + $0x1c] sm:$0xf]
    %v289 = vld [vmem:[%s8 + $0x20] sm:$0xf]
    %v290 = vld [vmem:[%s8 + $0x24] sm:$0xf]
    %v291 = vld [vmem:[%s8 + $0x28] sm:$0xf]
    %v292 = vld [vmem:[%s8 + $0x2c] sm:$0xf]
    %v293 = vld [vmem:[%s8 + $0x30] sm:$0xf]
    %v294 = vld [vmem:[%s8 + $0x34] sm:$0xf]
    %v295 = vld [vmem:[%s8 + $0x38] sm:$0xf]
    %v296 = vld [vmem:[%s8 + $0x3c] sm:$0xf]
    %v313 = vunpack.c.l.b16 %v281
    %v314 = vunpack.c.l.b16 %v282
    %v315 = vunpack.c.l.b16 %v283
    %v316 = vunpack.c.l.b16 %v284
    %v317 = vunpack.c.l.b16 %v285
    %v318 = vunpack.c.l.b16 %v286
    %v319 = vunpack.c.l.b16 %v287
    %v320 = vunpack.c.l.b16 %v288
    %v321 = vunpack.c.l.b16 %v289
    %v322 = vunpack.c.l.b16 %v290
    %v323 = vunpack.c.l.b16 %v291
    %v324 = vunpack.c.l.b16 %v292
    %v325 = vunpack.c.l.b16 %v293
    %v326 = vunpack.c.l.b16 %v294
    %v327 = vunpack.c.l.b16 %v295
    %v328 = vunpack.c.l.b16 %v296
    %v329 = vpack.c.b16 %v314, %v313
    %v330 = vpack.c.b16 %v316, %v315
    %v331 = vpack.c.b16 %v318, %v317
    %v332 = vpack.c.b16 %v320, %v319
    %v333 = vpack.c.b16 %v322, %v321
    %v334 = vpack.c.b16 %v324, %v323
    %v335 = vpack.c.b16 %v326, %v325
    %v336 = vpack.c.b16 %v328, %v327
    %345 = vmatprep.subr.bf16.mxu0 0
    %346 = vmatpush1.bf16.msra.mxu0 %v329
    %347 = vmatprep.subr.bf16.mxu0 0
    %348 = vmatpush1.bf16.msra.mxu0 %v330
    %349 = vmatprep.subr.bf16.mxu0 0
    %350 = vmatpush1.bf16.msra.mxu0 %v331
    %351 = vmatprep.subr.bf16.mxu0 0
    %352 = vmatpush1.bf16.msra.mxu0 %v332
    %353 = vmatprep.subr.bf16.mxu0 0
    %354 = vmatpush1.bf16.msra.mxu0 %v333
    %355 = vmatprep.subr.bf16.mxu0 0
    %356 = vmatpush1.bf16.msra.mxu0 %v334
    %357 = vmatprep.subr.bf16.mxu0 0
    %358 = vmatpush1.bf16.msra.mxu0 %v335
    %359 = vmatprep.subr.bf16.mxu0 0
    %360 = vmatpush1.bf16.msra.mxu0 %v336
    %361 = vmatprep.subr.bf16.mxu0 0
    %362 = vmatpush1.bf16.msra.mxu0 0
    %363 = vmatprep.subr.bf16.mxu0 0
    %364 = vmatpush1.bf16.msra.mxu0 0
    %365 = vmatprep.subr.bf16.mxu0 0
    %366 = vmatpush1.bf16.msra.mxu0 0
    %367 = vmatprep.subr.bf16.mxu0 0
    %368 = vmatpush1.bf16.msra.mxu0 0
    %369 = vmatprep.subr.bf16.mxu0 0
    %370 = vmatpush1.bf16.msra.mxu0 0
    %371 = vmatprep.subr.bf16.mxu0 0
    %372 = vmatpush1.bf16.msra.mxu0 0
    %373 = vmatprep.subr.bf16.mxu0 0
    %374 = vmatpush1.bf16.msra.mxu0 0
    %375 = vmatprep.subr.bf16.mxu0 0
    %376 = vmatpush1.bf16.msra.mxu0 0
    %377 = vmatprep.mubr.bf16.mxu0 0
    %378 = vmatmul.mubr.bf16.gmra.mrb[0].mxu0 %v280
    %v379 = vpop.f32.mrb[0].mxu0
    %v380 = vadd.f32 0.0, %v379
    %v381 = vpop.f32.mrb[0].mxu0
    %v382 = vpop.f32.mrb[0].mxu0
    %v383 = vpop.f32.mrb[0].mxu0
    %384 = vdwg.mxu0
    %v401 = vunpack.c.l.b16 %v264
    %v402 = vunpack.c.l.b16 %v265
    %v403 = vunpack.c.l.b16 %v266
    %v404 = vunpack.c.l.b16 %v267
    %v405 = vunpack.c.l.b16 %v268
    %v406 = vunpack.c.l.b16 %v269
    %v407 = vunpack.c.l.b16 %v270
    %v408 = vunpack.c.l.b16 %v271
    %v409 = vunpack.c.l.b16 %v272
    %v410 = vunpack.c.l.b16 %v273
    %v411 = vunpack.c.l.b16 %v274
    %v412 = vunpack.c.l.b16 %v275
    %v413 = vunpack.c.l.b16 %v276
    %v414 = vunpack.c.l.b16 %v277
    %v415 = vunpack.c.l.b16 %v278
    %v416 = vunpack.c.l.b16 %v279
    %v417 = vpack.c.b16 %v402, %v401
    %v418 = vpack.c.b16 %v404, %v403
    %v419 = vpack.c.b16 %v406, %v405
    %v420 = vpack.c.b16 %v408, %v407
    %v421 = vpack.c.b16 %v410, %v409
    %v422 = vpack.c.b16 %v412, %v411
    %v423 = vpack.c.b16 %v414, %v413
    %v424 = vpack.c.b16 %v416, %v415
    %433 = vmatprep.subr.bf16.mxu0 0
    %434 = vmatpush1.bf16.msra.mxu0 %v417
    %435 = vmatprep.subr.bf16.mxu0 0
    %436 = vmatpush1.bf16.msra.mxu0 %v418
    %437 = vmatprep.subr.bf16.mxu0 0
    %438 = vmatpush1.bf16.msra.mxu0 %v419
    %439 = vmatprep.subr.bf16.mxu0 0
    %440 = vmatpush1.bf16.msra.mxu0 %v420
    %441 = vmatprep.subr.bf16.mxu0 0
    %442 = vmatpush1.bf16.msra.mxu0 %v421
    %443 = vmatprep.subr.bf16.mxu0 0
    %444 = vmatpush1.bf16.msra.mxu0 %v422
    %445 = vmatprep.subr.bf16.mxu0 0
    %446 = vmatpush1.bf16.msra.mxu0 %v423
    %447 = vmatprep.subr.bf16.mxu0 0
    %448 = vmatpush1.bf16.msra.mxu0 %v424
    %449 = vmatprep.subr.bf16.mxu0 0
    %450 = vmatpush1.bf16.msra.mxu0 0
    %451 = vmatprep.subr.bf16.mxu0 0
    %452 = vmatpush1.bf16.msra.mxu0 0
    %453 = vmatprep.subr.bf16.mxu0 0
    %454 = vmatpush1.bf16.msra.mxu0 0
    %455 = vmatprep.subr.bf16.mxu0 0
    %456 = vmatpush1.bf16.msra.mxu0 0
    %457 = vmatprep.subr.bf16.mxu0 0
    %458 = vmatpush1.bf16.msra.mxu0 0
    %459 = vmatprep.subr.bf16.mxu0 0
    %460 = vmatpush1.bf16.msra.mxu0 0
    %461 = vmatprep.subr.bf16.mxu0 0
    %462 = vmatpush1.bf16.msra.mxu0 0
    %463 = vmatprep.subr.bf16.mxu0 0
    %464 = vmatpush1.bf16.msra.mxu0 0
    %465 = vmatprep.mubr.bf16.mxu0 0
    %466 = vmatmul.mubr.bf16.gmra.mrb[0].mxu0 %v263
    %v467 = vpop.f32.mrb[0].mxu0
    %v468 = vadd.f32 %v380, %v467
    %v469 = vpop.f32.mrb[0].mxu0
    %v470 = vpop.f32.mrb[0].mxu0
    %v471 = vpop.f32.mrb[0].mxu0
    %472 = vdwg.mxu0
    %v473 = vld [vmem:[%s9] sm:$0x1]
    %v475 = vlaneseq
    %v476 = vshrl.u32 %v475, 7
    %v477 = vsub.s32 0, %v476
    %v478 = vrot.slane %v473, %v477
    %v480 = vadd.f32 %v468, %v478
    %481 = vst [vmem:[#allocation2] sm:$0x3] %v480
    // Predicated region
    $region42: #{forward.1} parent=1 // pred_check
      _
    $region43: #{forward.1} parent=1 // pred_check_branch
      %483 = sbr.rel (0) target = $region45
    $region44: #{forward.1} parent=1 // pred_region
      %s485 = ssub.s32 32, 32
      %486 = vsyncadd [#allocation3], %s485
      %s488 = sshll.u32 [#allocation2], 4
      %s489 = int_to_ptr.vmem [resolvable:$true] %s488
      %491 = dma.vmem_to_hbm [thread:$0]  %s489, 32, %s10, [#allocation3]
    $region45: #{forward.1} parent=1 // pred_fallthru
      _
    // Predicated region
    $region46: #{forward.1} parent=1 // pred_check
      _
    $region47: #{forward.1} parent=1 // pred_check_branch
      %493 = sbr.rel (0) target = $region49
    $region48: #{forward.1} parent=1 // pred_region
      %494 = dma.done [#allocation3], 32
    $region49: #{forward.1} parent=1 // pred_fallthru
      _
    %495 = vsyncpa [#allocation3], 1

</llo_original>
